<compile_context>
chip_gen: v7x
topology: tpu7x:2x2x1
jax: 0.10.0
libtpu: 0.0.40
codegen_flags: <defaults>
</compile_context>

<pallas_src>
import functools

import jax
import jax.numpy as jnp
from jax import lax
from jax.experimental import pallas as pl
from jax.experimental.pallas import tpu as pltpu


def _coors_norm_kernel(x_ref, phase_ref, o_ref, *, eps, lanes):
    """One lane-dense block of the CoorsNorm forward.

    x_ref:     (tile_rows, lanes) block, lanes = 3*128, xyz interleaved along lanes.
    phase_ref: (1, 1) SMEM scalar holding phase = GELU(LayerNorm(1)(norm)).
    """
    x = x_ref[...].astype(jnp.float32)
    phase = phase_ref[0, 0]

    sq = x * x
    # Sum of squares of each xyz triple.  Rotations by +1 and +(lanes-1) add both
    # lane-neighbours, so the value is exact at the *middle* lane of every triple
    # regardless of the rotation direction convention.
    ssq = (sq
           + pltpu.roll(sq, shift=1, axis=1)
           + pltpu.roll(sq, shift=lanes - 1, axis=1))

    # {0, phase} mask: phase at the middle lane of each xyz triple, 0 elsewhere.
    # Built in-kernel from a 2-D iota (no extra streaming input).
    lane = lax.broadcasted_iota(jnp.int32, (1, lanes), 1)
    pm = jnp.where(lane % 3 == 1, phase, jnp.float32(0.0))

    # phase / clamp(||p||, eps) at the middle lane of each triple, 0 elsewhere.
    #   coors / clamp(norm, eps) == coors * rsqrt(max(norm^2, eps^2))
    scale_mid = lax.rsqrt(jnp.maximum(ssq, eps * eps)) * pm

    # Spread the middle-lane value to all three lanes of its triple: every
    # non-middle lane has exactly one middle-lane neighbour, the other is 0.
    scale = (scale_mid
             + pltpu.roll(scale_mid, shift=1, axis=1)
             + pltpu.roll(scale_mid, shift=lanes - 1, axis=1))

    o_ref[...] = (x * scale).astype(o_ref.dtype)
    # TODO(synk): on v7x, if a bundle profile shows the XLU/EUP slot saturating,
    # compact middle lanes to a 128-wide tile before rsqrt / restructure the rolls.


def _round_up(x, m):
    return (x + m - 1) // m * m


def _pick_tile_rows(rows, tile_rows):
    """Even, near-equal step count so v7x megacore splits the grid evenly."""
    if rows <= 8:
        return rows                      # single full-extent block
    n_steps = max(2, 2 * pl.cdiv(rows, 2 * tile_rows))
    return min(rows, _round_up(pl.cdiv(rows, n_steps), 8))


def _run_lane_dense(x2d, phase_smem, eps, tile_rows):
    rows, lanes = x2d.shape
    tr = _pick_tile_rows(rows, tile_rows)
    grid = (pl.cdiv(rows, tr),)

    kernel = functools.partial(_coors_norm_kernel, eps=float(eps), lanes=lanes)
    n_elem = rows * lanes
    cost = pl.CostEstimate(
        flops=10 * n_elem,
        transcendentals=n_elem,
        bytes_accessed=2 * n_elem * x2d.dtype.itemsize,
    )

    return pl.pallas_call(
        kernel,
        out_shape=jax.ShapeDtypeStruct((rows, lanes), x2d.dtype),
        grid=grid,
        in_specs=[
            pl.BlockSpec((tr, lanes), lambda i: (i, 0)),
            pl.BlockSpec(memory_space=pltpu.MemorySpace.SMEM),
        ],
        out_specs=pl.BlockSpec((tr, lanes), lambda i: (i, 0)),
        compiler_params=pltpu.CompilerParams(
            dimension_semantics=("parallel",),
            vmem_limit_bytes=32 * 1024 * 1024,
        ),
        cost_estimate=cost,
    )(x2d, phase_smem)


def coors_norm(coors, ln_weight, ln_bias, *, eps=1e-8, ln_eps=1e-5, tile_rows=4096):
    """Pallas implementation of CoorsNorm.forward.

    coors:     (..., 3) float array.
    ln_weight: (1,) LayerNorm weight (cancels exactly for a size-1 axis; kept for parity).
    ln_bias:   (1,) LayerNorm bias.
    ln_eps:    LayerNorm eps (also cancels exactly; kept for parity).
    """
    orig_shape = coors.shape
    if orig_shape[-1] != 3:
        raise ValueError("CoorsNorm kernel expects 3-component coordinates.")
    # ln_weight / ln_eps intentionally unused: LayerNorm over a size-1 axis has
    # centered value == 0 and var == 0, so its output is exactly the bias.

    lanes = 3 * 128  # 384: lane-dense row = 128 xyz points, triples intact in-row.

    # phase = GELU(LayerNorm(1)(norm)) == GELU(bias): data-independent scalar.
    ln = ln_bias.reshape(-1)[:1].astype(jnp.float32)
    phase = 0.5 * ln * (1.0 + lax.erf(ln / jnp.sqrt(2.0)))      # (1,)
    phase_smem = phase.reshape(1, 1)                            # lives in SMEM

    flat = coors.reshape(-1)
    total = flat.shape[0]
    main = (total // lanes) * lanes          # 384-aligned prefix (multiple of 3)
    tail = total - main                      # < 384 elements, i.e. < 128 points

    if main == 0:
        # Tiny input (< 128 points): pad to a single lane-dense row (negligible copy),
        # run the kernel, slice back.
        x2d = jnp.pad(flat, (0, lanes - total)).reshape(1, lanes)
        out_flat = _run_lane_dense(x2d, phase_smem, eps, tile_rows).reshape(-1)[:total]
        return out_flat.reshape(orig_shape)

    # Aligned prefix: zero-copy (metadata-only) lane-dense view -> kernel.
    x_main = flat if tail == 0 else flat[:main]
    out_main = _run_lane_dense(
        x_main.reshape(main // lanes, lanes), phase_smem, eps, tile_rows
    ).reshape(-1)

    if tail == 0:
        return out_main.reshape(orig_shape)

    # <=127-point ragged tail: tiny jnp epilogue (no full-array pad / slice).
    t = flat[main:].reshape(-1, 3).astype(jnp.float32)
    ssq = jnp.sum(t * t, axis=-1, keepdims=True)
    t_out = (t * (phase * lax.rsqrt(jnp.maximum(ssq, eps * eps)))).astype(coors.dtype)
    return jnp.concatenate([out_main, t_out.reshape(-1)]).reshape(orig_shape)


def coors_norm_ref(coors, ln_weight, ln_bias, eps=1e-8, ln_eps=1e-5):
    """Pure-JAX reference mirroring the PyTorch module."""
    norm = jnp.linalg.norm(coors, axis=-1, keepdims=True)
    normed = coors / jnp.maximum(norm, eps)
    mean = jnp.mean(norm, axis=-1, keepdims=True)
    var = jnp.mean((norm - mean) ** 2, axis=-1, keepdims=True)
    ln = (norm - mean) / jnp.sqrt(var + ln_eps) * ln_weight + ln_bias
    phase = 0.5 * ln * (1.0 + lax.erf(ln / jnp.sqrt(2.0)))
    return phase * normed


if __name__ == "__main__":
    key = jax.random.PRNGKey(0)
    k1, k2, k3 = jax.random.split(key, 3)

    # nn.LayerNorm(1) parameters: (1,) each.  Non-default bias so the GELU(bias)
    # phase is non-trivially exercised.
    ln_weight = jnp.ones((1,), dtype=jnp.float32)
    ln_bias = jnp.full((1,), 0.5, dtype=jnp.float32)

    # Small shape matching the module's intent (batch, points, xyz): exercises
    # the tiny (<128-point) single-row kernel path.
    coors_small = jax.random.normal(k1, (2, 8, 3), dtype=jnp.float32)
    out_s = jax.block_until_ready(coors_norm(coors_small, ln_weight, ln_bias))
    ref_s = coors_norm_ref(coors_small, ln_weight, ln_bias)
    assert out_s.shape == coors_small.shape and out_s.dtype == coors_small.dtype
    assert jnp.allclose(out_s, ref_s, atol=1e-5, rtol=1e-5), "mismatch (small)"

    # 128-point-aligned shape: pure zero-copy kernel path (no pad, no slice).
    coors_aligned = jax.random.normal(k2, (2, 256, 3), dtype=jnp.float32)
    out_a = jax.block_until_ready(coors_norm(coors_aligned, ln_weight, ln_bias))
    ref_a = coors_norm_ref(coors_aligned, ln_weight, ln_bias)
    assert out_a.shape == coors_aligned.shape and out_a.dtype == coors_aligned.dtype
    assert jnp.allclose(out_a, ref_a, atol=1e-5, rtol=1e-5), "mismatch (aligned)"

    # Lane-unaligned shape: aligned prefix through the kernel + tiny jnp tail.
    coors_ragged = jax.random.normal(k3, (3, 700, 3), dtype=jnp.float32)
    out_r = jax.block_until_ready(coors_norm(coors_ragged, ln_weight, ln_bias))
    ref_r = coors_norm_ref(coors_ragged, ln_weight, ln_bias)
    assert out_r.shape == coors_ragged.shape and out_r.dtype == coors_ragged.dtype
    assert jnp.allclose(out_r, ref_r, atol=1e-5, rtol=1e-5), "mismatch (ragged)"

    print("KERNEL_OK")
</pallas_src>

<mosaic_0001>
module attributes {stable_mosaic.version = 11 : i64} {
  func.func @_coors_norm_kernel(%arg0: i32, %arg1: memref<1x384xf32, #tpu.memory_space<vmem>>, %arg2: memref<1x1xf32, #tpu.memory_space<smem>>, %arg3: memref<1x384xf32, #tpu.memory_space<vmem>>) attributes {dimension_semantics = [#tpu.dimension_semantics<parallel>], iteration_bounds = array<i64: 1>, scalar_prefetch = 0 : i64, scratch_operands = 0 : i64, tpu.core_type = #tpu.core_type<tc>, window_params = [{transform_indices = @transform_0, window_bounds = array<i64: 1, 384>}, {transform_indices = @transform_1, window_bounds = array<i64: 1, 1>}, {transform_indices = @transform_2, window_bounds = array<i64: 1, 384>}]} {
    %c0 = arith.constant 0 : index
    %c0_0 = arith.constant 0 : index
    %0 = vector.load %arg1[%c0, %c0_0] : memref<1x384xf32, #tpu.memory_space<vmem>>, vector<1x384xf32>
    %c0_1 = arith.constant 0 : index
    %c0_2 = arith.constant 0 : index
    %1 = memref.load %arg2[%c0_1, %c0_2] : memref<1x1xf32, #tpu.memory_space<smem>>
    %2 = arith.mulf %0, %0 : vector<1x384xf32>
    %c1_i32 = arith.constant 1 : i32
    %3 = tpu.dynamic_rotate %2 by %c1_i32 dim 1 : vector<1x384xf32>, i32 -> vector<1x384xf32>
    %4 = arith.addf %2, %3 : vector<1x384xf32>
    %c383_i32 = arith.constant 383 : i32
    %5 = tpu.dynamic_rotate %2 by %c383_i32 dim 1 : vector<1x384xf32>, i32 -> vector<1x384xf32>
    %6 = arith.addf %4, %5 : vector<1x384xf32>
    %7 = tpu.iota {dimensions = array<i32: 1>} : vector<1x384xi32>
    %c3_i32 = arith.constant 3 : i32
    %c0_i32 = arith.constant 0 : i32
    %8 = arith.cmpi eq, %c3_i32, %c0_i32 : i32
    %c1_i32_3 = arith.constant 1 : i32
    %9 = arith.select %8, %c1_i32_3, %c3_i32 : i32
    %10 = vector.broadcast %9 : i32 to vector<1x384xi32>
    %11 = arith.remsi %7, %10 : vector<1x384xi32>
    %c0_i32_4 = arith.constant 0 : i32
    %12 = vector.broadcast %c0_i32_4 : i32 to vector<1x384xi32>
    %13 = arith.cmpi ne, %11, %12 : vector<1x384xi32>
    %c0_i32_5 = arith.constant 0 : i32
    %14 = vector.broadcast %c0_i32_5 : i32 to vector<1x384xi32>
    %15 = arith.cmpi slt, %11, %14 : vector<1x384xi32>
    %c0_i32_6 = arith.constant 0 : i32
    %16 = arith.cmpi slt, %9, %c0_i32_6 : i32
    %17 = vector.broadcast %16 : i1 to vector<1x384xi1>
    %18 = vector.broadcast %17 : vector<1x384xi1> to vector<1x384xi1>
    %19 = arith.xori %15, %18 : vector<1x384xi1>
    %20 = arith.andi %19, %13 : vector<1x384xi1>
    %21 = vector.broadcast %9 : i32 to vector<1x384xi32>
    %22 = arith.addi %11, %21 : vector<1x384xi32>
    %23 = arith.select %20, %22, %11 : vector<1x384xi1>, vector<1x384xi32>
    %c1_i32_7 = arith.constant 1 : i32
    %24 = vector.broadcast %c1_i32_7 : i32 to vector<1x384xi32>
    %25 = arith.cmpi eq, %23, %24 : vector<1x384xi32>
    %cst = arith.constant 0.000000e+00 : f32
    %26 = vector.broadcast %1 : f32 to vector<1x384xf32>
    %27 = vector.broadcast %cst : f32 to vector<1x384xf32>
    %28 = arith.select %25, %26, %27 : vector<1x384xi1>, vector<1x384xf32>
    %cst_8 = arith.constant 1.000000e-16 : f32
    %29 = vector.broadcast %cst_8 : f32 to vector<1x384xf32>
    %30 = arith.maximumf %6, %29 : vector<1x384xf32>
    %31 = math.rsqrt %30 : vector<1x384xf32>
    %32 = arith.mulf %31, %28 : vector<1x384xf32>
    %c1_i32_9 = arith.constant 1 : i32
    %33 = tpu.dynamic_rotate %32 by %c1_i32_9 dim 1 : vector<1x384xf32>, i32 -> vector<1x384xf32>
    %34 = arith.addf %32, %33 : vector<1x384xf32>
    %c383_i32_10 = arith.constant 383 : i32
    %35 = tpu.dynamic_rotate %32 by %c383_i32_10 dim 1 : vector<1x384xf32>, i32 -> vector<1x384xf32>
    %36 = arith.addf %34, %35 : vector<1x384xf32>
    %37 = arith.mulf %0, %36 : vector<1x384xf32>
    %c0_11 = arith.constant 0 : index
    %c0_12 = arith.constant 0 : index
    %38 = vector.load %arg3[%c0_11, %c0_12] : memref<1x384xf32, #tpu.memory_space<vmem>>, vector<1x384xf32>
    tpu.vector_store %arg3[%c0_11, %c0_12], %37 {strides = array<i32>} : memref<1x384xf32, #tpu.memory_space<vmem>>, vector<1x384xf32>,
    return
  }
  func.func @transform_0(%arg0: i32) -> (i32, i32) {
    %c0_i32 = arith.constant 0 : i32
    %c0_i32_0 = arith.constant 0 : i32
    return %arg0, %c0_i32 : i32, i32
  }
  func.func @transform_1(%arg0: i32) -> (i32, i32) {
    %c0_i32 = arith.constant 0 : i32
    %c0_i32_0 = arith.constant 0 : i32
    %c0_i32_1 = arith.constant 0 : i32
    return %c0_i32, %c0_i32_0 : i32, i32
  }
  func.func @transform_2(%arg0: i32) -> (i32, i32) {
    %c0_i32 = arith.constant 0 : i32
    %c0_i32_0 = arith.constant 0 : i32
    return %arg0, %c0_i32 : i32, i32
  }
}

</mosaic_0001>

<llo_original>
// kernel: tpu_custom_call.1
$region0: #{tpu_custom_call.1}
  #allocation0 [shape = 'u32[]', space=smem, size = 0x4, offset = 0x4, fixed_abs, tag = 'smem constant byte address 0x4 - core index']
  #allocation1 [shape = 'u32[144,128]{1,0:T(1,128)}', space=vmem, size = 0x12000, scoped, tag = 'internal scratch']
  #allocation2 [shape = 'f32[1,1]{1,0:T(1,128)S(6)}', space=smem, size = 0x200, scoped, tag = 'scoped memory for tpu_custom_call.1']
  %s0 = inlined_call_operand.vmem [shape: f32[1,384], index: 0, kind: input, shape index: {}]
  %s1 = inlined_call_operand.<no memory space> [shape: f32[1,1], index: 1, kind: input, shape index: {}]
  %s2 = inlined_call_operand.hbm [shape: f32[1,384], index: 2, kind: output, shape index: {}]
  %s3 = sld [smem:[#allocation0]]
  $region18: #{tpu_custom_call.1} parent=0
    _
  %s5 = ssub.s32 1, %s3
  %s6 = scalar_select 0, %s5, %s3
  %7 = sst [smem:[#allocation2]] %s1
  $region1: #{tpu_custom_call.1} parent=0
    #allocation3 [shape = 'u8[1536]{0}', space=vmem, size = 0x800, scoped, tag = 'output window, operand 0, single buffered']
    #allocation4 [shape = 's32[1]{0}', space=sflag, size = 0x4, scoped, tag = 'scoped memory for tpu_custom_call.1']
    %8 = vsyncpa [#allocation4], 0
    // Predicated region
    $region2: #{tpu_custom_call.1} parent=1 // pred_check
      _
    $region3: #{tpu_custom_call.1} parent=1 // pred_check_branch
      %10 = sbr.rel (0) target = $region5
    $region4: #{tpu_custom_call.1} parent=1 // pred_region
      _
    $region5: #{tpu_custom_call.1} parent=1 // pred_fallthru
      _
    // Predicated region
    $region6: #{tpu_custom_call.1} parent=1 // pred_check
      _
    $region7: #{tpu_custom_call.1} parent=1 // pred_check_branch
      %12 = sbr.rel (0) target = $region9
    $region8: #{tpu_custom_call.1} parent=1 // pred_region
      _
    $region9: #{tpu_custom_call.1} parent=1 // pred_fallthru
      _
    %v13 = vld [vmem:[%s0] sm:$0x7]
    %s14 = sld [smem:[#allocation2]]
    %v15 = vmul.f32 %v13, %v13
    %v17 = vlaneseq
    %v18 = vshrl.u32 %v17, 7
    %v19 = vsub.s32 0, %v18
    %v20 = vrot.slane %v15, %v19
    %v21 = vlaneseq
    %v22 = vshrl.u32 %v21, 7
    %v23 = vsub.s32 1, %v22
    %v24 = vrot.slane %v15, %v23
    %v25 = vlaneseq
    %v26 = vshrl.u32 %v25, 7
    %v27 = vsub.s32 2, %v26
    %v28 = vrot.slane %v15, %v27
    %32 = vrot.lane.b32.xlu0 %v20, 1
    %v33 = vpop.permute.xlu0 %32
    %34 = vrot.lane.b32.xlu0 %v24, 1
    %v35 = vpop.permute.xlu0 %34
    %36 = vrot.lane.b32.xlu0 %v28, 1
    %v37 = vpop.permute.xlu0 %36
    %v38 = vlaneseq
    %v39 = vand.u32 %v38, 127
    %vm40 = vcmp.lt.s32.totalorder %v39, 1
    %v41 = vsel %vm40, %v35, %v37
    %v42 = vsel %vm40, %v33, %v35
    %v43 = vsel %vm40, %v37, %v33
    %v47 = vcombine.low %v43, %v42
    %v49 = vunpack.c.l.s4 1966171168
    %v50 = vunpack.c.0.s8 %v49
    %v51 = vlaneseq
    %v52 = vshrl.u32 %v51, 7
    %v53 = vsub.s32 %v50, %v52
    %v54 = vrot.slane %v47, %v53
    %v56 = vunpack.c.l.s4 1966171168
    %v57 = vunpack.c.0.s8 %v56
    %v58 = vlaneseq
    %v59 = vshrl.u32 %v58, 7
    %v60 = vsub.s32 %v57, %v59
    %v61 = vrot.slane %v41, %v60
    %v62 = vcombine.low %v54, %v61
    %v64 = vunpack.c.l.s4 1966171168
    %v65 = vunpack.c.0.s8 %v64
    %v66 = vlaneseq
    %v67 = vshrl.u32 %v66, 7
    %v68 = vsub.s32 %v65, %v67
    %v69 = vrot.slane %v62, %v68
    %v71 = vadd.f32 %v15, %v69
    %72 = vrot.lane.b32.xlu0 %v20, 127
    %v73 = vpop.permute.xlu0 %72
    %74 = vrot.lane.b32.xlu0 %v24, 127
    %v75 = vpop.permute.xlu0 %74
    %76 = vrot.lane.b32.xlu0 %v28, 127
    %v77 = vpop.permute.xlu0 %76
    %vm78 = vcmp.lt.s32.totalorder %v39, 127
    %v79 = vsel %vm78, %v75, %v77
    %v80 = vsel %vm78, %v73, %v75
    %v81 = vsel %vm78, %v77, %v73
    %v85 = vcombine.low %v80, %v79
    %v87 = vunpack.c.l.s4 1966171168
    %v88 = vunpack.c.0.s8 %v87
    %v89 = vlaneseq
    %v90 = vshrl.u32 %v89, 7
    %v91 = vsub.s32 %v88, %v90
    %v92 = vrot.slane %v85, %v91
    %v94 = vunpack.c.l.s4 1966171168
    %v95 = vunpack.c.0.s8 %v94
    %v96 = vlaneseq
    %v97 = vshrl.u32 %v96, 7
    %v98 = vsub.s32 %v95, %v97
    %v99 = vrot.slane %v81, %v98
    %v100 = vcombine.low %v92, %v99
    %v102 = vunpack.c.l.s4 1966171168
    %v103 = vunpack.c.0.s8 %v102
    %v104 = vlaneseq
    %v105 = vshrl.u32 %v104, 7
    %v106 = vsub.s32 %v103, %v105
    %v107 = vrot.slane %v100, %v106
    %v109 = vadd.f32 %v71, %v107
    %v110 = vadd.s32 %v39, 128
    %v111 = vadd.s32 %v39, 256
    %vm112 = vcmp.lt.s32.totalorder %v39, 0
    %v113 = vsub.s32 0, %v39
    %v114 = vsel %vm112, %v113, %v39
    %v115 = vmul.u32.u64.compose %v114, 2863311531
    %v116 = vextract.low.u32 %v115
    %v117 = vextract.high.u32 %v115
    %v118 = vshrl.u32 %v117, 1
    %v119 = vmul.u32 %v118, 3
    %v120 = vsub.s32 %v114, %v119
    %v121 = vsub.s32 0, %v120
    %v122 = vsel %vm112, %v121, %v120
    %vm123 = vcmp.lt.s32.totalorder %v110, 0
    %v124 = vsub.s32 0, %v110
    %v125 = vsel %vm123, %v124, %v110
    %v126 = vmul.u32.u64.compose %v125, 2863311531
    %v127 = vextract.low.u32 %v126
    %v128 = vextract.high.u32 %v126
    %v129 = vshrl.u32 %v128, 1
    %v130 = vmul.u32 %v129, 3
    %v131 = vsub.s32 %v125, %v130
    %v132 = vsub.s32 0, %v131
    %v133 = vsel %vm123, %v132, %v131
    %vm134 = vcmp.lt.s32.totalorder %v111, 0
    %v135 = vsub.s32 0, %v111
    %v136 = vsel %vm134, %v135, %v111
    %v137 = vmul.u32.u64.compose %v136, 2863311531
    %v138 = vextract.low.u32 %v137
    %v139 = vextract.high.u32 %v137
    %v140 = vshrl.u32 %v139, 1
    %v141 = vmul.u32 %v140, 3
    %v142 = vsub.s32 %v136, %v141
    %v143 = vsub.s32 0, %v142
    %v144 = vsel %vm134, %v143, %v142
    %vm145 = vcmp.ne.s32.totalorder %v122, 0
    %vm146 = vcmp.ne.s32.totalorder %v133, 0
    %vm147 = vcmp.ne.s32.totalorder %v144, 0
    %vm148 = vcmp.lt.s32.totalorder %v122, 0
    %vm149 = vcmp.lt.s32.totalorder %v133, 0
    %vm150 = vcmp.lt.s32.totalorder %v144, 0
    %vm151 = vmand %vm148, %vm145
    %vm152 = vmand %vm149, %vm146
    %vm153 = vmand %vm150, %vm147
    %v154 = vadd.s32 %v122, 3
    %v155 = vadd.s32 %v133, 3
    %v156 = vadd.s32 %v144, 3
    %v157 = vsel %vm151, %v154, %v122
    %v158 = vsel %vm152, %v155, %v133
    %v159 = vsel %vm153, %v156, %v144
    %vm160 = vcmp.eq.s32.totalorder %v157, 1
    %vm161 = vcmp.eq.s32.totalorder %v158, 1
    %vm162 = vcmp.eq.s32.totalorder %v159, 1
    %v163 = vstv %s14
    %v164 = vsel %vm160, %v163, 0.0
    %v165 = vsel %vm161, %v163, 0.0
    %v166 = vsel %vm162, %v163, 0.0
    %v167 = vmax.f32 %v109, 1e-16
    %v168 = vrsqrt.pop %v167
    %v172 = vcombine.low %v164, %v165
    %v174 = vunpack.c.l.s4 1966171168
    %v175 = vunpack.c.0.s8 %v174
    %v176 = vlaneseq
    %v177 = vshrl.u32 %v176, 7
    %v178 = vsub.s32 %v175, %v177
    %v179 = vrot.slane %v172, %v178
    %v181 = vunpack.c.l.s4 1966171168
    %v182 = vunpack.c.0.s8 %v181
    %v183 = vlaneseq
    %v184 = vshrl.u32 %v183, 7
    %v185 = vsub.s32 %v182, %v184
    %v186 = vrot.slane %v166, %v185
    %v187 = vcombine.low %v179, %v186
    %v189 = vunpack.c.l.s4 1966171168
    %v190 = vunpack.c.0.s8 %v189
    %v191 = vlaneseq
    %v192 = vshrl.u32 %v191, 7
    %v193 = vsub.s32 %v190, %v192
    %v194 = vrot.slane %v187, %v193
    %v196 = vmul.f32 %v168, %v194
    %v198 = vlaneseq
    %v199 = vshrl.u32 %v198, 7
    %v200 = vsub.s32 0, %v199
    %v201 = vrot.slane %v196, %v200
    %v202 = vlaneseq
    %v203 = vshrl.u32 %v202, 7
    %v204 = vsub.s32 1, %v203
    %v205 = vrot.slane %v196, %v204
    %v206 = vlaneseq
    %v207 = vshrl.u32 %v206, 7
    %v208 = vsub.s32 2, %v207
    %v209 = vrot.slane %v196, %v208
    %213 = vrot.lane.b32.xlu0 %v201, 1
    %v214 = vpop.permute.xlu0 %213
    %215 = vrot.lane.b32.xlu0 %v205, 1
    %v216 = vpop.permute.xlu0 %215
    %217 = vrot.lane.b32.xlu0 %v209, 1
    %v218 = vpop.permute.xlu0 %217
    %v219 = vsel %vm40, %v216, %v218
    %v220 = vsel %vm40, %v214, %v216
    %v221 = vsel %vm40, %v218, %v214
    %v225 = vcombine.low %v221, %v220
    %v227 = vunpack.c.l.s4 1966171168
    %v228 = vunpack.c.0.s8 %v227
    %v229 = vlaneseq
    %v230 = vshrl.u32 %v229, 7
    %v231 = vsub.s32 %v228, %v230
    %v232 = vrot.slane %v225, %v231
    %v234 = vunpack.c.l.s4 1966171168
    %v235 = vunpack.c.0.s8 %v234
    %v236 = vlaneseq
    %v237 = vshrl.u32 %v236, 7
    %v238 = vsub.s32 %v235, %v237
    %v239 = vrot.slane %v219, %v238
    %v240 = vcombine.low %v232, %v239
    %v242 = vunpack.c.l.s4 1966171168
    %v243 = vunpack.c.0.s8 %v242
    %v244 = vlaneseq
    %v245 = vshrl.u32 %v244, 7
    %v246 = vsub.s32 %v243, %v245
    %v247 = vrot.slane %v240, %v246
    %v249 = vadd.f32 %v196, %v247
    %250 = vrot.lane.b32.xlu0 %v201, 127
    %v251 = vpop.permute.xlu0 %250
    %252 = vrot.lane.b32.xlu0 %v205, 127
    %v253 = vpop.permute.xlu0 %252
    %254 = vrot.lane.b32.xlu0 %v209, 127
    %v255 = vpop.permute.xlu0 %254
    %v256 = vsel %vm78, %v253, %v255
    %v257 = vsel %vm78, %v251, %v253
    %v258 = vsel %vm78, %v255, %v251
    %v262 = vcombine.low %v257, %v256
    %v264 = vunpack.c.l.s4 1966171168
    %v265 = vunpack.c.0.s8 %v264
    %v266 = vlaneseq
    %v267 = vshrl.u32 %v266, 7
    %v268 = vsub.s32 %v265, %v267
    %v269 = vrot.slane %v262, %v268
    %v271 = vunpack.c.l.s4 1966171168
    %v272 = vunpack.c.0.s8 %v271
    %v273 = vlaneseq
    %v274 = vshrl.u32 %v273, 7
    %v275 = vsub.s32 %v272, %v274
    %v276 = vrot.slane %v258, %v275
    %v277 = vcombine.low %v269, %v276
    %v279 = vunpack.c.l.s4 1966171168
    %v280 = vunpack.c.0.s8 %v279
    %v281 = vlaneseq
    %v282 = vshrl.u32 %v281, 7
    %v283 = vsub.s32 %v280, %v282
    %v284 = vrot.slane %v277, %v283
    %v286 = vadd.f32 %v249, %v284
    %v287 = vmul.f32 %v13, %v286
    %v288 = vlaneseq
    %vm289 = vcmp.ge.s32.totalorder %v288, 0
    %vm290 = vcmp.lt.s32.totalorder %v288, 384
    %vm291 = vmand %vm289, %vm290
    %292 = vst.msk [vmem:[#allocation3] sm:$0x7] %vm291, %v287
    // Predicated region
    $region10: #{tpu_custom_call.1} parent=1 // pred_check
      _
    $region11: #{tpu_custom_call.1} parent=1 // pred_check_branch
      %294 = sbr.rel (0) target = $region13
    $region12: #{tpu_custom_call.1} parent=1 // pred_region
      %s296 = ssub.s32 48, 48
      %297 = vsyncadd [#allocation4], %s296
      %s299 = sshll.u32 [#allocation3], 4
      %s300 = int_to_ptr.vmem [resolvable:$true] %s299
      %302 = dma.vmem_to_hbm [thread:$0]  %s300, 48, %s2, [#allocation4]
    $region13: #{tpu_custom_call.1} parent=1 // pred_fallthru
      _
    // Predicated region
    $region14: #{tpu_custom_call.1} parent=1 // pred_check
      _
    $region15: #{tpu_custom_call.1} parent=1 // pred_check_branch
      %304 = sbr.rel (0) target = $region17
    $region16: #{tpu_custom_call.1} parent=1 // pred_region
      %305 = dma.done [#allocation4], 48
    $region17: #{tpu_custom_call.1} parent=1 // pred_fallthru
      _
    %306 = vsyncpa [#allocation4], 1

</llo_original>
